<compile_context>
chip_gen: v5e
topology: v5e:2x2
jax: 0.10.0
libtpu: 0.0.40
codegen_flags: <defaults>
</compile_context>

<pallas_src>
import functools
import math

import jax
import jax.numpy as jnp
from jax.experimental import pallas as pl
from jax.experimental.pallas import tpu as pltpu


def conv_same_padding(in_size, kernel, stride=1, dilation=1):
    eff = (kernel - 1) * dilation + 1
    out_size = (in_size + stride - 1) // stride
    pad = max(0, (out_size - 1) * stride + eff - in_size)
    if pad % 2 == 0:
        return pad // 2, pad // 2
    return (pad - 1) // 2, (pad + 1) // 2


# --------------------------- Pallas kernel (hot path) ---------------------------

def _fused_resnet_block_kernel(xcat_ref, wcat_ref, w2cat_ref, shcat_ref, sh2_ref,
                               o_ref, *, ho, lane, mm_dtype):
    """Whole stacked_resnet_block, batch folded into M (single grid step).

    xcat  : (M, 3*k1p)     [xe0 | xo | xe2] stride-2 row phases of the zero-padded
                           input, lane-padded; M = N*Ho rows (batch folded into M).
    wcat  : (3*k1p, 2*lane) left 128 lanes: res1 kh-tap matrices stacked along K
                           (bias/BN folded); right 128 lanes: res3 1x1 stride-2
                           shortcut (only the xe0 K-block is nonzero).
    w2cat : (lane, 3*lane)  res2 kh-tap matrices [kh=0 | kh=1 | kh=2] (bias/BN folded).
    shcat : (1, 2*lane)     fused conv-bias + BN shifts for res1 | res3.
    sh2   : (1, lane)       fused conv-bias + BN shift for res2.
    o     : (M, lane)       lane-dense (32, 128) unmasked f32 store.
    """
    f32 = jnp.float32

    # --- res1 (all 3 kh taps) + res3 shortcut: ONE long-K, 256-wide MXU matmul ------
    t = jnp.dot(xcat_ref[...], wcat_ref[...], preferred_element_type=f32)
    t = t + shcat_ref[...]                       # per-lane conv-bias + BN shift
    y1 = jnp.maximum(t[:, :lane], 0.0)           # res1 activation: ReLU
    shortcut = t[:, lane:]                       # res3 activation: Identity

    # --- res2: one matmul against the 3 stacked kh-tap matrices ----------------------
    p = jnp.dot(y1.astype(mm_dtype), w2cat_ref[...], preferred_element_type=f32)
    m = p.shape[0]
    # kh row shifts via XLU sublane rolls; zero the SAME-pad edge rows and the rows
    # that would leak across the image boundary (batch is folded into M).
    row = jax.lax.broadcasted_iota(jnp.int32, (m, lane), 0)
    if (ho & (ho - 1)) == 0:
        h = jnp.bitwise_and(row, ho - 1)
    else:
        h = jax.lax.rem(row, ho)
    not_top = (h != 0).astype(f32)               # kh=0 tap invalid at each image's row 0
    not_bot = (h != ho - 1).astype(f32)          # kh=2 tap invalid at each image's last row
    acc2 = p[:, lane:2 * lane]
    acc2 = acc2 + not_top * pltpu.roll(p[:, :lane], shift=1, axis=0)
    acc2 = acc2 + not_bot * pltpu.roll(p[:, 2 * lane:], shift=m - 1, axis=0)
    y2 = acc2 + sh2_ref[...]                     # res2 activation: Identity

    # --- residual add + final ReLU, unmasked lane-dense (32, 128) store -------------
    o_ref[...] = jnp.maximum(y2 + shortcut, 0.0).astype(o_ref.dtype)


# ------------------- host-side weight folding (run ONCE, not per call) -------------------

def _row_tap_matrices(w, in_width, out_width, stride, pad_left):
    """Turn a (Kh, Kw, Cin, Cout) conv weight into Kh block-structured matrices of
    shape (in_width*Cin, out_width*Cout): for input rows laid out as lanes wi*Cin+ci
    and output lanes wo*Cout+co, out_row = in_row @ M[kh] performs the kw taps
    (and the column stride / SAME width padding) of row-tap kh."""
    n_kh, n_kw, cin, cout = w.shape
    wi = jnp.arange(in_width)[:, None]
    wo = jnp.arange(out_width)[None, :]
    k = wi - stride * wo + pad_left                        # required kw tap per (wi, wo)
    valid = (k >= 0) & (k < n_kw)
    kc = jnp.clip(k, 0, n_kw - 1)
    taps = w[:, kc, :, :] * valid[None, :, :, None, None].astype(w.dtype)
    taps = jnp.transpose(taps, (0, 1, 3, 2, 4))            # (Kh, in_w, Cin, out_w, Cout)
    return taps.reshape(n_kh, in_width * cin, out_width * cout)


def _fold_bias_bn(w_mat, block_params, out_width, eps=1e-5):
    """Fold conv bias + BatchNorm2d(eval) into the matmul weight and a per-lane shift:
       bn(conv(x) + b) = conv(x)*scale + ((b - mean)*scale + beta)."""
    _, b, gamma, beta, mean, var = block_params
    scale = gamma / jnp.sqrt(var + eps)
    shift = beta + (b - mean) * scale
    scale_l = jnp.tile(scale, out_width)                   # lane index = wo*Cout + co
    shift_l = jnp.tile(shift, out_width)
    return w_mat * scale_l, shift_l.reshape(1, -1)


def pack_stacked_resnet_block_params(params, spatial_in=32, eps=1e-5,
                                     weights_dtype=jnp.bfloat16):
    """One-time packing of all stacked_resnet_block parameters into the fused,
    lane-dense matrices consumed by the Pallas kernel.  Call once; reuse per step."""
    w1 = params['res1'][0]
    w2 = params['res2'][0]
    w3 = params['res3'][0]
    cin, cout = w1.shape[2], w1.shape[3]
    H = W = spatial_in
    Ho, Wo = H // 2, W // 2
    ph = conv_same_padding(H, 3, 2)
    pw = conv_same_padding(W, 3, 2)
    # The folded row-tap layout hard-codes the downsampling SAME padding.
    assert ph == (0, 1) and pw == (0, 1), (ph, pw)
    assert conv_same_padding(Ho, 3, 1) == (1, 1)
    Hp, Wp = H + sum(ph), W + sum(pw)
    lane_out = Wo * cout
    assert lane_out % 128 == 0, lane_out
    k1 = Wp * cin
    k1p = pl.cdiv(k1, 128) * 128

    # res1: 3x3 stride-2, per-kh-tap matrices, lane padded, BN scale folded.
    w1m = _row_tap_matrices(w1, Wp, Wo, stride=2, pad_left=0)          # (3, k1, lane)
    w1m = jnp.pad(w1m, ((0, 0), (0, k1p - k1), (0, 0)))
    w1m, sh1 = _fold_bias_bn(w1m, params['res1'], Wo, eps)
    # res2: 3x3 stride-1 SAME, per-kh-tap matrices.
    w2m = _row_tap_matrices(w2, Wo, Wo, stride=1, pad_left=1)          # (3, lane, lane)
    w2m, sh2 = _fold_bias_bn(w2m, params['res2'], Wo, eps)
    # res3: 1x1 stride-2 shortcut (consumes only the xe0 = padded-row-2h phase).
    w3m = _row_tap_matrices(w3, Wp, Wo, stride=2, pad_left=0)[0]       # (k1, lane)
    w3m = jnp.pad(w3m, ((0, k1p - k1), (0, 0)))
    w3m, sh3 = _fold_bias_bn(w3m, params['res3'], Wo, eps)

    # Fused res1+res3 matrix: K blocks = [xe0 | xo | xe2] phases, N = [res1 | res3].
    w1k = w1m.reshape(3 * k1p, lane_out)
    w3k = jnp.pad(w3m, ((0, 2 * k1p), (0, 0)))             # zero for xo / xe2 K-blocks
    wcat = jnp.concatenate([w1k, w3k], axis=1).astype(weights_dtype)   # (3*k1p, 2*lane)
    w2cat = jnp.concatenate([w2m[0], w2m[1], w2m[2]], axis=1).astype(weights_dtype)
    shcat = jnp.concatenate([sh1, sh3], axis=1).astype(jnp.float32)    # (1, 2*lane)
    return dict(wcat=wcat, w2cat=w2cat, shcat=shcat, sh2=sh2.astype(jnp.float32))


# ---------------- jitted forward: input packing + ONE fused pallas_call ----------------

@jax.jit
def stacked_resnet_block_forward(x_nchw, packed):
    """Forward pass of the downsampling stacked_resnet_block (stack>0, res_block==0)."""
    # TODO(synk): only the downsample configuration (strides=2, res3 1x1 shortcut) is
    # implemented; the identity-shortcut / stride-1 variant is not exercised here.
    N, cin, H, W = x_nchw.shape
    Ho, Wo = H // 2, W // 2
    wcat, w2cat = packed['wcat'], packed['w2cat']
    shcat, sh2 = packed['shcat'], packed['sh2']
    lane_out = sh2.shape[1]
    cout = lane_out // Wo
    k1p = wcat.shape[0] // 3
    ph = conv_same_padding(H, 3, 2)
    pw = conv_same_padding(W, 3, 2)
    assert ph == (0, 1) and pw == (0, 1), (ph, pw)
    Hp, Wp = H + 1, W + 1
    k1 = Wp * cin
    M = N * Ho
    assert k1 <= k1p and wcat.shape == (3 * k1p, 2 * lane_out), (k1, wcat.shape)
    assert w2cat.shape == (lane_out, 3 * lane_out) and shcat.shape == (1, 2 * lane_out)
    assert M % 8 == 0 and lane_out % 128 == 0 and k1p % 128 == 0

    # x-dependent packing (cheap: transpose, 2 pads, 3 strided row slices, concat).
    x = jnp.transpose(x_nchw, (0, 2, 3, 1)).astype(jnp.float32)        # NHWC
    xp = jnp.pad(x, ((0, 0), (0, 1), (0, 1), (0, 0)))                  # ZeroPad2d (0,1,0,1)
    xpf = jnp.pad(xp.reshape(N, Hp, k1), ((0, 0), (0, 0), (0, k1p - k1)))
    xe0 = xpf[:, 0:2 * Ho:2]                                           # padded rows 2h
    xo = xpf[:, 1:2 * Ho:2]                                            # padded rows 2h+1
    xe2 = xpf[:, 2:2 * Ho + 1:2]                                       # padded rows 2h+2
    xcat = (jnp.concatenate([xe0, xo, xe2], axis=-1)
            .reshape(M, 3 * k1p).astype(wcat.dtype))                   # (32, 768)

    kernel = functools.partial(_fused_resnet_block_kernel,
                               ho=Ho, lane=lane_out, mm_dtype=w2cat.dtype)
    flops = 2 * M * (3 * k1p) * (2 * lane_out) + 2 * M * lane_out * (3 * lane_out)
    bytes_accessed = (xcat.size * xcat.dtype.itemsize
                      + wcat.size * wcat.dtype.itemsize
                      + w2cat.size * w2cat.dtype.itemsize
                      + (shcat.size + sh2.size + M * lane_out) * 4)

    out = pl.pallas_call(
        kernel,
        out_shape=jax.ShapeDtypeStruct((M, lane_out), jnp.float32),
        grid_spec=pltpu.PrefetchScalarGridSpec(
            num_scalar_prefetch=0,
            grid=(1,),                                               # single step: batch is in M
            in_specs=[
                pl.BlockSpec((M, 3 * k1p), lambda i: (0, 0)),            # xcat
                pl.BlockSpec((3 * k1p, 2 * lane_out), lambda i: (0, 0)),  # wcat
                pl.BlockSpec((lane_out, 3 * lane_out), lambda i: (0, 0)),  # w2cat
                pl.BlockSpec((1, 2 * lane_out), lambda i: (0, 0)),        # shcat
                pl.BlockSpec((1, lane_out), lambda i: (0, 0)),            # sh2
            ],
            out_specs=pl.BlockSpec((M, lane_out), lambda i: (0, 0)),
        ),
        compiler_params=pltpu.CompilerParams(dimension_semantics=("arbitrary",)),
        cost_estimate=pl.CostEstimate(flops=flops, transcendentals=0,
                                      bytes_accessed=bytes_accessed),
    )(xcat, wcat, w2cat, shcat, sh2)

    out = out.reshape(N, Ho, Wo, cout)                     # (M, Wo*Cout) -> NHWC
    return jnp.transpose(out, (0, 3, 1, 2))                # NCHW like the PyTorch module


# ------------------------------ plain-JAX reference ------------------------------

def _ref_resnet_block(x_nhwc, block_params, kernel, stride, relu, eps=1e-5):
    w, b, gamma, beta, mean, var = block_params
    ph = conv_same_padding(x_nhwc.shape[1], kernel, stride)
    pw = conv_same_padding(x_nhwc.shape[2], kernel, stride)
    y = jax.lax.conv_general_dilated(
        x_nhwc, w, window_strides=(stride, stride), padding=(ph, pw),
        dimension_numbers=("NHWC", "HWIO", "NHWC"),
        precision=jax.lax.Precision.HIGHEST)
    y = y + b
    y = gamma * (y - mean) / jnp.sqrt(var + eps) + beta
    return jnp.maximum(y, 0.0) if relu else y


def _ref_forward(x_nchw, params):
    x = jnp.transpose(x_nchw, (0, 2, 3, 1))
    y = _ref_resnet_block(x, params['res1'], 3, 2, True)
    y = _ref_resnet_block(y, params['res2'], 3, 1, False)
    s = _ref_resnet_block(x, params['res3'], 1, 2, False)
    return jnp.transpose(jnp.maximum(s + y, 0.0), (0, 3, 1, 2))


# --------------------------- deterministic parameter init ---------------------------

def init_block_params(key, cin, cout, kernel):
    k1, k2, k3, k4, k5, k6 = jax.random.split(key, 6)
    fan_in = cin * kernel * kernel
    w = jax.random.normal(k1, (kernel, kernel, cin, cout), jnp.float32) / math.sqrt(fan_in)
    b = 0.1 * jax.random.normal(k2, (cout,), jnp.float32)
    gamma = 1.0 + 0.1 * jax.random.normal(k3, (cout,), jnp.float32)
    beta = 0.1 * jax.random.normal(k4, (cout,), jnp.float32)
    mean = 0.1 * jax.random.normal(k5, (cout,), jnp.float32)
    var = 1.0 + 0.1 * jnp.abs(jax.random.normal(k6, (cout,), jnp.float32))
    return (w, b, gamma, beta, mean, var)


if __name__ == "__main__":
    stack, res_block = 1, 0
    num_filters, input_num_filters = 8, 4
    spatial_out = 32 // 2 ** stack          # 16
    strides = 2                             # stack > 0 and res_block == 0
    spatial_in = spatial_out * strides      # 32

    key = jax.random.PRNGKey(0)
    kx, k1, k2, k3 = jax.random.split(key, 4)
    x_nchw = jax.random.normal(
        kx, (2, input_num_filters, spatial_in, spatial_in), jnp.float32)
    params = {
        'res1': init_block_params(k1, input_num_filters, num_filters, 3),
        'res2': init_block_params(k2, num_filters, num_filters, 3),
        'res3': init_block_params(k3, input_num_filters, num_filters, 1),
    }

    # One-time weight folding (hoisted out of the per-call jit).
    packed = pack_stacked_resnet_block_params(params, spatial_in=spatial_in)      # bf16 perf path
    packed_f32 = pack_stacked_resnet_block_params(params, spatial_in=spatial_in,
                                                  weights_dtype=jnp.float32)      # exact-fold check

    out = stacked_resnet_block_forward(x_nchw, packed)
    jax.block_until_ready(out)
    assert out.shape == (2, num_filters, spatial_out, spatial_out), out.shape
    assert bool(jnp.all(out >= 0.0))        # final ReLU

    ref = _ref_forward(x_nchw, params)
    # Exact-fold f32 path: tight tolerance so layout/indexing bugs cannot hide.
    out_f32 = stacked_resnet_block_forward(x_nchw, packed_f32)
    err_f32 = float(jnp.max(jnp.abs(out_f32 - ref)))
    assert err_f32 < 1e-4, f"f32-fold max abs error vs reference: {err_f32}"
    # bf16 perf path: only error source is bf16 quantization of inputs/weights across
    # two stacked 3x3 convs (est. max ~1e-2); 2e-2 keeps margin while catching bugs.
    err_bf16 = float(jnp.max(jnp.abs(out - ref)))
    assert err_bf16 < 2e-2, f"bf16 max abs error vs reference: {err_bf16}"
    print("KERNEL_OK")
</pallas_src>

<mosaic_0001>
module attributes {stable_mosaic.version = 11 : i64} {
  func.func @_fused_resnet_block_kernel(%arg0: i32, %arg1: memref<32x768xbf16, #tpu.memory_space<vmem>>, %arg2: memref<768x256xbf16, #tpu.memory_space<vmem>>, %arg3: memref<128x384xbf16, #tpu.memory_space<vmem>>, %arg4: memref<1x256xf32, #tpu.memory_space<vmem>>, %arg5: memref<1x128xf32, #tpu.memory_space<vmem>>, %arg6: memref<32x128xf32, #tpu.memory_space<vmem>>) attributes {dimension_semantics = [#tpu.dimension_semantics<arbitrary>], iteration_bounds = array<i64: 1>, scalar_prefetch = 0 : i64, scratch_operands = 0 : i64, tpu.core_type = #tpu.core_type<tc>, window_params = [{pipeline_mode = #tpu.pipeline_mode<synchronous>, transform_indices = @transform_0, window_bounds = array<i64: 32, 768>}, {pipeline_mode = #tpu.pipeline_mode<synchronous>, transform_indices = @transform_1, window_bounds = array<i64: 768, 256>}, {pipeline_mode = #tpu.pipeline_mode<synchronous>, transform_indices = @transform_2, window_bounds = array<i64: 128, 384>}, {pipeline_mode = #tpu.pipeline_mode<synchronous>, transform_indices = @transform_3, window_bounds = array<i64: 1, 256>}, {pipeline_mode = #tpu.pipeline_mode<synchronous>, transform_indices = @transform_4, window_bounds = array<i64: 1, 128>}, {pipeline_mode = #tpu.pipeline_mode<synchronous>, transform_indices = @transform_5, window_bounds = array<i64: 32, 128>}]} {
    %c0 = arith.constant 0 : index
    %c0_0 = arith.constant 0 : index
    %0 = vector.load %arg1[%c0, %c0_0] : memref<32x768xbf16, #tpu.memory_space<vmem>>, vector<32x768xbf16>
    %c0_1 = arith.constant 0 : index
    %c0_2 = arith.constant 0 : index
    %1 = vector.load %arg2[%c0_1, %c0_2] : memref<768x256xbf16, #tpu.memory_space<vmem>>, vector<768x256xbf16>
    %cst = arith.constant dense<0.000000e+00> : vector<32x256xf32>
    %2 = tpu.matmul %0, %1, %cst {dimension_numbers = #tpu.dot_dimension_numbers<[1], [0], [0], [1], [0, 0, 1, 1], [], []>} : vector<32x768xbf16>, vector<768x256xbf16>, vector<32x256xf32> -> vector<32x256xf32>
    %c0_3 = arith.constant 0 : index
    %c0_4 = arith.constant 0 : index
    %3 = vector.load %arg4[%c0_3, %c0_4] : memref<1x256xf32, #tpu.memory_space<vmem>>, vector<1x256xf32>
    %4 = vector.broadcast %3 : vector<1x256xf32> to vector<32x256xf32>
    %5 = arith.addf %2, %4 : vector<32x256xf32>
    %6 = vector.extract_strided_slice %5 {offsets = [0, 0], sizes = [32, 128], strides = [1, 1]} : vector<32x256xf32> to vector<32x128xf32>
    %cst_5 = arith.constant 0.000000e+00 : f32
    %7 = vector.broadcast %cst_5 : f32 to vector<32x128xf32>
    %8 = arith.maximumf %6, %7 : vector<32x128xf32>
    %9 = vector.extract_strided_slice %5 {offsets = [0, 128], sizes = [32, 128], strides = [1, 1]} : vector<32x256xf32> to vector<32x128xf32>
    %10 = arith.truncf %8 : vector<32x128xf32> to vector<32x128xbf16>
    %c0_6 = arith.constant 0 : index
    %c0_7 = arith.constant 0 : index
    %11 = vector.load %arg3[%c0_6, %c0_7] : memref<128x384xbf16, #tpu.memory_space<vmem>>, vector<128x384xbf16>
    %cst_8 = arith.constant dense<0.000000e+00> : vector<32x384xf32>
    %12 = tpu.matmul %10, %11, %cst_8 {dimension_numbers = #tpu.dot_dimension_numbers<[1], [0], [0], [1], [0, 0, 1, 1], [], []>} : vector<32x128xbf16>, vector<128x384xbf16>, vector<32x384xf32> -> vector<32x384xf32>
    %13 = tpu.iota {dimensions = array<i32: 0>} : vector<32x128xi32>
    %c15_i32 = arith.constant 15 : i32
    %14 = vector.broadcast %c15_i32 : i32 to vector<32x128xi32>
    %15 = arith.andi %13, %14 : vector<32x128xi32>
    %c0_i32 = arith.constant 0 : i32
    %16 = vector.broadcast %c0_i32 : i32 to vector<32x128xi32>
    %17 = arith.cmpi ne, %15, %16 : vector<32x128xi32>
    %18 = arith.extui %17 : vector<32x128xi1> to vector<32x128xi32>
    %19 = arith.sitofp %18 : vector<32x128xi32> to vector<32x128xf32>
    %c15_i32_9 = arith.constant 15 : i32
    %20 = vector.broadcast %c15_i32_9 : i32 to vector<32x128xi32>
    %21 = arith.cmpi ne, %15, %20 : vector<32x128xi32>
    %22 = arith.extui %21 : vector<32x128xi1> to vector<32x128xi32>
    %23 = arith.sitofp %22 : vector<32x128xi32> to vector<32x128xf32>
    %24 = vector.extract_strided_slice %12 {offsets = [0, 128], sizes = [32, 128], strides = [1, 1]} : vector<32x384xf32> to vector<32x128xf32>
    %25 = vector.extract_strided_slice %12 {offsets = [0, 0], sizes = [32, 128], strides = [1, 1]} : vector<32x384xf32> to vector<32x128xf32>
    %c1_i32 = arith.constant 1 : i32
    %26 = tpu.dynamic_rotate %25 by %c1_i32 dim 0 : vector<32x128xf32>, i32 -> vector<32x128xf32>
    %27 = arith.mulf %19, %26 : vector<32x128xf32>
    %28 = arith.addf %24, %27 : vector<32x128xf32>
    %29 = vector.extract_strided_slice %12 {offsets = [0, 256], sizes = [32, 128], strides = [1, 1]} : vector<32x384xf32> to vector<32x128xf32>
    %c31_i32 = arith.constant 31 : i32
    %30 = tpu.dynamic_rotate %29 by %c31_i32 dim 0 : vector<32x128xf32>, i32 -> vector<32x128xf32>
    %31 = arith.mulf %23, %30 : vector<32x128xf32>
    %32 = arith.addf %28, %31 : vector<32x128xf32>
    %c0_10 = arith.constant 0 : index
    %c0_11 = arith.constant 0 : index
    %33 = vector.load %arg5[%c0_10, %c0_11] : memref<1x128xf32, #tpu.memory_space<vmem>>, vector<1x128xf32>
    %34 = vector.broadcast %33 : vector<1x128xf32> to vector<32x128xf32>
    %35 = arith.addf %32, %34 : vector<32x128xf32>
    %36 = arith.addf %35, %9 : vector<32x128xf32>
    %cst_12 = arith.constant 0.000000e+00 : f32
    %37 = vector.broadcast %cst_12 : f32 to vector<32x128xf32>
    %38 = arith.maximumf %36, %37 : vector<32x128xf32>
    %c0_13 = arith.constant 0 : index
    %c0_14 = arith.constant 0 : index
    %39 = vector.load %arg6[%c0_13, %c0_14] : memref<32x128xf32, #tpu.memory_space<vmem>>, vector<32x128xf32>
    tpu.vector_store %arg6[%c0_13, %c0_14], %38 {strides = array<i32>} : memref<32x128xf32, #tpu.memory_space<vmem>>, vector<32x128xf32>,
    return
  }
  func.func @transform_0(%arg0: i32) -> (i32, i32) {
    %c0_i32 = arith.constant 0 : i32
    %c0_i32_0 = arith.constant 0 : i32
    %c0_i32_1 = arith.constant 0 : i32
    return %c0_i32, %c0_i32_0 : i32, i32
  }
  func.func @transform_1(%arg0: i32) -> (i32, i32) {
    %c0_i32 = arith.constant 0 : i32
    %c0_i32_0 = arith.constant 0 : i32
    %c0_i32_1 = arith.constant 0 : i32
    return %c0_i32, %c0_i32_0 : i32, i32
  }
  func.func @transform_2(%arg0: i32) -> (i32, i32) {
    %c0_i32 = arith.constant 0 : i32
    %c0_i32_0 = arith.constant 0 : i32
    %c0_i32_1 = arith.constant 0 : i32
    return %c0_i32, %c0_i32_0 : i32, i32
  }
  func.func @transform_3(%arg0: i32) -> (i32, i32) {
    %c0_i32 = arith.constant 0 : i32
    %c0_i32_0 = arith.constant 0 : i32
    %c0_i32_1 = arith.constant 0 : i32
    return %c0_i32, %c0_i32_0 : i32, i32
  }
  func.func @transform_4(%arg0: i32) -> (i32, i32) {
    %c0_i32 = arith.constant 0 : i32
    %c0_i32_0 = arith.constant 0 : i32
    %c0_i32_1 = arith.constant 0 : i32
    return %c0_i32, %c0_i32_0 : i32, i32
  }
  func.func @transform_5(%arg0: i32) -> (i32, i32) {
    %c0_i32 = arith.constant 0 : i32
    %c0_i32_0 = arith.constant 0 : i32
    %c0_i32_1 = arith.constant 0 : i32
    return %c0_i32, %c0_i32_0 : i32, i32
  }
}

</mosaic_0001>

<llo_original>
// kernel: stacked_resnet_block_forward.1
$region0: #{stacked_resnet_block_forward.1}
  #allocation0 [shape = 'u32[]', space=smem, size = 0x4, offset = 0x4, fixed_abs, tag = 'smem constant byte address 0x4 - core index']
  #allocation1 [shape = 'u32[72,128]{1,0:T(1,128)}', space=vmem, size = 0x9000, scoped, tag = 'internal scratch']
  %s0 = inlined_call_operand.vmem [shape: bf16[32,768], index: 0, kind: input, shape index: {}]
  %s1 = inlined_call_operand.vmem [shape: bf16[768,256], index: 1, kind: input, shape index: {}]
  %s2 = inlined_call_operand.vmem [shape: bf16[128,384], index: 2, kind: input, shape index: {}]
  %s3 = inlined_call_operand.vmem [shape: f32[1,256], index: 3, kind: input, shape index: {}]
  %s4 = inlined_call_operand.vmem [shape: f32[1,128], index: 4, kind: input, shape index: {}]
  %s5 = inlined_call_operand.vmem [shape: f32[32,128], index: 5, kind: output, shape index: {}]
  %s6 = sld [smem:[#allocation0]]
  $region30: #{stacked_resnet_block_forward.1} parent=0
    _
  %s8 = ssub.s32 1, %s6
  %s9 = scalar_select 0, %s8, %s6
  // Predicated region
  $region2: #{stacked_resnet_block_forward.1} parent=0 // pred_check
    _
  $region3: #{stacked_resnet_block_forward.1} parent=0 // pred_check_branch
    %11 = sbr.rel (0) target = $region5
  $region4: #{stacked_resnet_block_forward.1} parent=0 // pred_region
    _
  $region5: #{stacked_resnet_block_forward.1} parent=0 // pred_fallthru
    _
  // Predicated region
  $region6: #{stacked_resnet_block_forward.1} parent=0 // pred_check
    _
  $region7: #{stacked_resnet_block_forward.1} parent=0 // pred_check_branch
    %13 = sbr.rel (0) target = $region9
  $region8: #{stacked_resnet_block_forward.1} parent=0 // pred_region
    _
  $region9: #{stacked_resnet_block_forward.1} parent=0 // pred_fallthru
    _
  // Predicated region
  $region10: #{stacked_resnet_block_forward.1} parent=0 // pred_check
    _
  $region11: #{stacked_resnet_block_forward.1} parent=0 // pred_check_branch
    %15 = sbr.rel (0) target = $region13
  $region12: #{stacked_resnet_block_forward.1} parent=0 // pred_region
    _
  $region13: #{stacked_resnet_block_forward.1} parent=0 // pred_fallthru
    _
  // Predicated region
  $region14: #{stacked_resnet_block_forward.1} parent=0 // pred_check
    _
  $region15: #{stacked_resnet_block_forward.1} parent=0 // pred_check_branch
    %17 = sbr.rel (0) target = $region17
  $region16: #{stacked_resnet_block_forward.1} parent=0 // pred_region
    _
  $region17: #{stacked_resnet_block_forward.1} parent=0 // pred_fallthru
    _
  // Predicated region
  $region18: #{stacked_resnet_block_forward.1} parent=0 // pred_check
    _
  $region19: #{stacked_resnet_block_forward.1} parent=0 // pred_check_branch
    %19 = sbr.rel (0) target = $region21
  $region20: #{stacked_resnet_block_forward.1} parent=0 // pred_region
    _
  $region21: #{stacked_resnet_block_forward.1} parent=0 // pred_fallthru
    _
  %v20 = vld [vmem:[%s0] sm:$0xff]
  %v21 = vld [vmem:[%s0 + $0x8] sm:$0xff]
  %v22 = vld [vmem:[%s0 + $0x10] sm:$0xff]
  %v23 = vld [vmem:[%s0 + $0x18] sm:$0xff]
  %v24 = vld [vmem:[%s0 + $0x20] sm:$0xff]
  %v25 = vld [vmem:[%s0 + $0x28] sm:$0xff]
  %v26 = vld [vmem:[%s0 + $0x30] sm:$0xff]
  %v27 = vld [vmem:[%s0 + $0x38] sm:$0xff]
  %v28 = vld [vmem:[%s0 + $0x40] sm:$0xff]
  %v29 = vld [vmem:[%s0 + $0x48] sm:$0xff]
  %v30 = vld [vmem:[%s0 + $0x50] sm:$0xff]
  %v31 = vld [vmem:[%s0 + $0x58] sm:$0xff]
  %v32 = vld [vmem:[%s1] sm:$0xff]
  %v33 = vld [vmem:[%s1 + $0x8] sm:$0xff]
  %v34 = vld [vmem:[%s1 + $0x10] sm:$0xff]
  %v35 = vld [vmem:[%s1 + $0x18] sm:$0xff]
  %v36 = vld [vmem:[%s1 + $0x20] sm:$0xff]
  %v37 = vld [vmem:[%s1 + $0x28] sm:$0xff]
  %v38 = vld [vmem:[%s1 + $0x30] sm:$0xff]
  %v39 = vld [vmem:[%s1 + $0x38] sm:$0xff]
  %v40 = vld [vmem:[%s1 + $0x40] sm:$0xff]
  %v41 = vld [vmem:[%s1 + $0x48] sm:$0xff]
  %v42 = vld [vmem:[%s1 + $0x50] sm:$0xff]
  %v43 = vld [vmem:[%s1 + $0x58] sm:$0xff]
  %v44 = vld [vmem:[%s1 + $0x60] sm:$0xff]
  %v45 = vld [vmem:[%s1 + $0x68] sm:$0xff]
  %v46 = vld [vmem:[%s1 + $0x70] sm:$0xff]
  %v47 = vld [vmem:[%s1 + $0x78] sm:$0xff]
  %v48 = vld [vmem:[%s1 + $0x80] sm:$0xff]
  %v49 = vld [vmem:[%s1 + $0x88] sm:$0xff]
  %v50 = vld [vmem:[%s1 + $0x90] sm:$0xff]
  %v51 = vld [vmem:[%s1 + $0x98] sm:$0xff]
  %v52 = vld [vmem:[%s1 + $0xa0] sm:$0xff]
  %v53 = vld [vmem:[%s1 + $0xa8] sm:$0xff]
  %v54 = vld [vmem:[%s1 + $0xb0] sm:$0xff]
  %v55 = vld [vmem:[%s1 + $0xb8] sm:$0xff]
  %v56 = vld [vmem:[%s1 + $0xc0] sm:$0xff]
  %v57 = vld [vmem:[%s1 + $0xc8] sm:$0xff]
  %v58 = vld [vmem:[%s1 + $0xd0] sm:$0xff]
  %v59 = vld [vmem:[%s1 + $0xd8] sm:$0xff]
  %v60 = vld [vmem:[%s1 + $0xe0] sm:$0xff]
  %v61 = vld [vmem:[%s1 + $0xe8] sm:$0xff]
  %v62 = vld [vmem:[%s1 + $0xf0] sm:$0xff]
  %v63 = vld [vmem:[%s1 + $0xf8] sm:$0xff]
  %v64 = vld [vmem:[%s1 + $0x100] sm:$0xff]
  %v65 = vld [vmem:[%s1 + $0x108] sm:$0xff]
  %v66 = vld [vmem:[%s1 + $0x110] sm:$0xff]
  %v67 = vld [vmem:[%s1 + $0x118] sm:$0xff]
  %v68 = vld [vmem:[%s1 + $0x120] sm:$0xff]
  %v69 = vld [vmem:[%s1 + $0x128] sm:$0xff]
  %v70 = vld [vmem:[%s1 + $0x130] sm:$0xff]
  %v71 = vld [vmem:[%s1 + $0x138] sm:$0xff]
  %v72 = vld [vmem:[%s1 + $0x140] sm:$0xff]
  %v73 = vld [vmem:[%s1 + $0x148] sm:$0xff]
  %v74 = vld [vmem:[%s1 + $0x150] sm:$0xff]
  %v75 = vld [vmem:[%s1 + $0x158] sm:$0xff]
  %v76 = vld [vmem:[%s1 + $0x160] sm:$0xff]
  %v77 = vld [vmem:[%s1 + $0x168] sm:$0xff]
  %v78 = vld [vmem:[%s1 + $0x170] sm:$0xff]
  %v79 = vld [vmem:[%s1 + $0x178] sm:$0xff]
  %v80 = vld [vmem:[%s1 + $0x180] sm:$0xff]
  %v81 = vld [vmem:[%s1 + $0x188] sm:$0xff]
  %v82 = vld [vmem:[%s1 + $0x190] sm:$0xff]
  %v83 = vld [vmem:[%s1 + $0x198] sm:$0xff]
  %v84 = vld [vmem:[%s1 + $0x1a0] sm:$0xff]
  %v85 = vld [vmem:[%s1 + $0x1a8] sm:$0xff]
  %v86 = vld [vmem:[%s1 + $0x1b0] sm:$0xff]
  %v87 = vld [vmem:[%s1 + $0x1b8] sm:$0xff]
  %v88 = vld [vmem:[%s1 + $0x1c0] sm:$0xff]
  %v89 = vld [vmem:[%s1 + $0x1c8] sm:$0xff]
  %v90 = vld [vmem:[%s1 + $0x1d0] sm:$0xff]
  %v91 = vld [vmem:[%s1 + $0x1d8] sm:$0xff]
  %v92 = vld [vmem:[%s1 + $0x1e0] sm:$0xff]
  %v93 = vld [vmem:[%s1 + $0x1e8] sm:$0xff]
  %v94 = vld [vmem:[%s1 + $0x1f0] sm:$0xff]
  %v95 = vld [vmem:[%s1 + $0x1f8] sm:$0xff]
  %v96 = vld [vmem:[%s1 + $0x200] sm:$0xff]
  %v97 = vld [vmem:[%s1 + $0x208] sm:$0xff]
  %v98 = vld [vmem:[%s1 + $0x210] sm:$0xff]
  %v99 = vld [vmem:[%s1 + $0x218] sm:$0xff]
  %v100 = vld [vmem:[%s1 + $0x220] sm:$0xff]
  %v101 = vld [vmem:[%s1 + $0x228] sm:$0xff]
  %v102 = vld [vmem:[%s1 + $0x230] sm:$0xff]
  %v103 = vld [vmem:[%s1 + $0x238] sm:$0xff]
  %v104 = vld [vmem:[%s1 + $0x240] sm:$0xff]
  %v105 = vld [vmem:[%s1 + $0x248] sm:$0xff]
  %v106 = vld [vmem:[%s1 + $0x250] sm:$0xff]
  %v107 = vld [vmem:[%s1 + $0x258] sm:$0xff]
  %v108 = vld [vmem:[%s1 + $0x260] sm:$0xff]
  %v109 = vld [vmem:[%s1 + $0x268] sm:$0xff]
  %v110 = vld [vmem:[%s1 + $0x270] sm:$0xff]
  %v111 = vld [vmem:[%s1 + $0x278] sm:$0xff]
  %v112 = vld [vmem:[%s1 + $0x280] sm:$0xff]
  %v113 = vld [vmem:[%s1 + $0x288] sm:$0xff]
  %v114 = vld [vmem:[%s1 + $0x290] sm:$0xff]
  %v115 = vld [vmem:[%s1 + $0x298] sm:$0xff]
  %v116 = vld [vmem:[%s1 + $0x2a0] sm:$0xff]
  %v117 = vld [vmem:[%s1 + $0x2a8] sm:$0xff]
  %v118 = vld [vmem:[%s1 + $0x2b0] sm:$0xff]
  %v119 = vld [vmem:[%s1 + $0x2b8] sm:$0xff]
  %v120 = vld [vmem:[%s1 + $0x2c0] sm:$0xff]
  %v121 = vld [vmem:[%s1 + $0x2c8] sm:$0xff]
  %v122 = vld [vmem:[%s1 + $0x2d0] sm:$0xff]
  %v123 = vld [vmem:[%s1 + $0x2d8] sm:$0xff]
  %v124 = vld [vmem:[%s1 + $0x2e0] sm:$0xff]
  %v125 = vld [vmem:[%s1 + $0x2e8] sm:$0xff]
  %v126 = vld [vmem:[%s1 + $0x2f0] sm:$0xff]
  %v127 = vld [vmem:[%s1 + $0x2f8] sm:$0xff]
  %v128 = vld [vmem:[%s3] sm:$0x3]
  %v130 = vperm.slane %v128, 0
  %v131 = vperm.slane %v128, 1
  %v146 = vunpack.c.l.b16 %v20
  %v147 = vunpack.c.h.b16 %v20
  %v148 = vunpack.c.l.b16 %v21
  %v149 = vunpack.c.h.b16 %v21
  %v150 = vunpack.c.l.b16 %v22
  %v151 = vunpack.c.h.b16 %v22
  %v152 = vunpack.c.l.b16 %v23
  %v153 = vunpack.c.h.b16 %v23
  %v154 = vunpack.c.l.b16 %v24
  %v155 = vunpack.c.h.b16 %v24
  %v156 = vunpack.c.l.b16 %v25
  %v157 = vunpack.c.h.b16 %v25
  %v158 = vunpack.c.l.b16 %v26
  %v159 = vunpack.c.h.b16 %v26
  %v160 = vunpack.c.l.b16 %v27
  %v161 = vunpack.c.h.b16 %v27
  %v162 = vunpack.c.l.b16 %v28
  %v163 = vunpack.c.h.b16 %v28
  %v164 = vunpack.c.l.b16 %v29
  %v165 = vunpack.c.h.b16 %v29
  %v166 = vunpack.c.l.b16 %v30
  %v167 = vunpack.c.h.b16 %v30
  %v168 = vunpack.c.l.b16 %v31
  %v169 = vunpack.c.h.b16 %v31
  %v170 = vpack.c.b16 %v152, %v146
  %v171 = vpack.c.b16 %v153, %v147
  %v172 = vpack.c.b16 %v154, %v148
  %v173 = vpack.c.b16 %v155, %v149
  %v174 = vpack.c.b16 %v156, %v150
  %v175 = vpack.c.b16 %v157, %v151
  %v176 = vpack.c.b16 %v164, %v158
  %v177 = vpack.c.b16 %v165, %v159
  %v178 = vpack.c.b16 %v166, %v160
  %v179 = vpack.c.b16 %v167, %v161
  %v180 = vpack.c.b16 %v168, %v162
  %v181 = vpack.c.b16 %v169, %v163
  %v290 = vunpack.c.l.b16 %v32
  %v291 = vunpack.c.h.b16 %v32
  %v292 = vunpack.c.l.b16 %v33
  %v293 = vunpack.c.h.b16 %v33
  %v294 = vunpack.c.l.b16 %v34
  %v295 = vunpack.c.h.b16 %v34
  %v296 = vunpack.c.l.b16 %v35
  %v297 = vunpack.c.h.b16 %v35
  %v298 = vunpack.c.l.b16 %v36
  %v299 = vunpack.c.h.b16 %v36
  %v300 = vunpack.c.l.b16 %v37
  %v301 = vunpack.c.h.b16 %v37
  %v302 = vunpack.c.l.b16 %v38
  %v303 = vunpack.c.h.b16 %v38
  %v304 = vunpack.c.l.b16 %v39
  %v305 = vunpack.c.h.b16 %v39
  %v306 = vunpack.c.l.b16 %v40
  %v307 = vunpack.c.h.b16 %v40
  %v308 = vunpack.c.l.b16 %v41
  %v309 = vunpack.c.h.b16 %v41
  %v310 = vunpack.c.l.b16 %v42
  %v311 = vunpack.c.h.b16 %v42
  %v312 = vunpack.c.l.b16 %v43
  %v313 = vunpack.c.h.b16 %v43
  %v314 = vunpack.c.l.b16 %v44
  %v315 = vunpack.c.h.b16 %v44
  %v316 = vunpack.c.l.b16 %v45
  %v317 = vunpack.c.h.b16 %v45
  %v318 = vunpack.c.l.b16 %v46
  %v319 = vunpack.c.h.b16 %v46
  %v320 = vunpack.c.l.b16 %v47
  %v321 = vunpack.c.h.b16 %v47
  %v322 = vunpack.c.l.b16 %v48
  %v323 = vunpack.c.h.b16 %v48
  %v324 = vunpack.c.l.b16 %v49
  %v325 = vunpack.c.h.b16 %v49
  %v326 = vunpack.c.l.b16 %v50
  %v327 = vunpack.c.h.b16 %v50
  %v328 = vunpack.c.l.b16 %v51
  %v329 = vunpack.c.h.b16 %v51
  %v330 = vunpack.c.l.b16 %v52
  %v331 = vunpack.c.h.b16 %v52
  %v332 = vunpack.c.l.b16 %v53
  %v333 = vunpack.c.h.b16 %v53
  %v334 = vunpack.c.l.b16 %v54
  %v335 = vunpack.c.h.b16 %v54
  %v336 = vunpack.c.l.b16 %v55
  %v337 = vunpack.c.h.b16 %v55
  %v338 = vunpack.c.l.b16 %v56
  %v339 = vunpack.c.h.b16 %v56
  %v340 = vunpack.c.l.b16 %v57
  %v341 = vunpack.c.h.b16 %v57
  %v342 = vunpack.c.l.b16 %v58
  %v343 = vunpack.c.h.b16 %v58
  %v344 = vunpack.c.l.b16 %v59
  %v345 = vunpack.c.h.b16 %v59
  %v346 = vunpack.c.l.b16 %v60
  %v347 = vunpack.c.h.b16 %v60
  %v348 = vunpack.c.l.b16 %v61
  %v349 = vunpack.c.h.b16 %v61
  %v350 = vunpack.c.l.b16 %v62
  %v351 = vunpack.c.h.b16 %v62
  %v352 = vunpack.c.l.b16 %v63
  %v353 = vunpack.c.h.b16 %v63
  %v354 = vunpack.c.l.b16 %v64
  %v355 = vunpack.c.h.b16 %v64
  %v356 = vunpack.c.l.b16 %v65
  %v357 = vunpack.c.h.b16 %v65
  %v358 = vunpack.c.l.b16 %v66
  %v359 = vunpack.c.h.b16 %v66
  %v360 = vunpack.c.l.b16 %v67
  %v361 = vunpack.c.h.b16 %v67
  %v362 = vunpack.c.l.b16 %v68
  %v363 = vunpack.c.h.b16 %v68
  %v364 = vunpack.c.l.b16 %v69
  %v365 = vunpack.c.h.b16 %v69
  %v366 = vunpack.c.l.b16 %v70
  %v367 = vunpack.c.h.b16 %v70
  %v368 = vunpack.c.l.b16 %v71
  %v369 = vunpack.c.h.b16 %v71
  %v370 = vunpack.c.l.b16 %v72
  %v371 = vunpack.c.h.b16 %v72
  %v372 = vunpack.c.l.b16 %v73
  %v373 = vunpack.c.h.b16 %v73
  %v374 = vunpack.c.l.b16 %v74
  %v375 = vunpack.c.h.b16 %v74
  %v376 = vunpack.c.l.b16 %v75
  %v377 = vunpack.c.h.b16 %v75
  %v378 = vunpack.c.l.b16 %v76
  %v379 = vunpack.c.h.b16 %v76
  %v380 = vunpack.c.l.b16 %v77
  %v381 = vunpack.c.h.b16 %v77
  %v382 = vunpack.c.l.b16 %v78
  %v383 = vunpack.c.h.b16 %v78
  %v384 = vunpack.c.l.b16 %v79
  %v385 = vunpack.c.h.b16 %v79
  %v386 = vunpack.c.l.b16 %v80
  %v387 = vunpack.c.h.b16 %v80
  %v388 = vunpack.c.l.b16 %v81
  %v389 = vunpack.c.h.b16 %v81
  %v390 = vunpack.c.l.b16 %v82
  %v391 = vunpack.c.h.b16 %v82
  %v392 = vunpack.c.l.b16 %v83
  %v393 = vunpack.c.h.b16 %v83
  %v394 = vunpack.c.l.b16 %v84
  %v395 = vunpack.c.h.b16 %v84
  %v396 = vunpack.c.l.b16 %v85
  %v397 = vunpack.c.h.b16 %v85
  %v398 = vunpack.c.l.b16 %v86
  %v399 = vunpack.c.h.b16 %v86
  %v400 = vunpack.c.l.b16 %v87
  %v401 = vunpack.c.h.b16 %v87
  %v402 = vunpack.c.l.b16 %v88
  %v403 = vunpack.c.h.b16 %v88
  %v404 = vunpack.c.l.b16 %v89
  %v405 = vunpack.c.h.b16 %v89
  %v406 = vunpack.c.l.b16 %v90
  %v407 = vunpack.c.h.b16 %v90
  %v408 = vunpack.c.l.b16 %v91
  %v409 = vunpack.c.h.b16 %v91
  %v410 = vunpack.c.l.b16 %v92
  %v411 = vunpack.c.h.b16 %v92
  %v412 = vunpack.c.l.b16 %v93
  %v413 = vunpack.c.h.b16 %v93
  %v414 = vunpack.c.l.b16 %v94
  %v415 = vunpack.c.h.b16 %v94
  %v416 = vunpack.c.l.b16 %v95
  %v417 = vunpack.c.h.b16 %v95
  %v418 = vunpack.c.l.b16 %v96
  %v419 = vunpack.c.h.b16 %v96
  %v420 = vunpack.c.l.b16 %v97
  %v421 = vunpack.c.h.b16 %v97
  %v422 = vunpack.c.l.b16 %v98
  %v423 = vunpack.c.h.b16 %v98
  %v424 = vunpack.c.l.b16 %v99
  %v425 = vunpack.c.h.b16 %v99
  %v426 = vunpack.c.l.b16 %v100
  %v427 = vunpack.c.h.b16 %v100
  %v428 = vunpack.c.l.b16 %v101
  %v429 = vunpack.c.h.b16 %v101
  %v430 = vunpack.c.l.b16 %v102
  %v431 = vunpack.c.h.b16 %v102
  %v432 = vunpack.c.l.b16 %v103
  %v433 = vunpack.c.h.b16 %v103
  %v434 = vunpack.c.l.b16 %v104
  %v435 = vunpack.c.h.b16 %v104
  %v436 = vunpack.c.l.b16 %v105
  %v437 = vunpack.c.h.b16 %v105
  %v438 = vunpack.c.l.b16 %v106
  %v439 = vunpack.c.h.b16 %v106
  %v440 = vunpack.c.l.b16 %v107
  %v441 = vunpack.c.h.b16 %v107
  %v442 = vunpack.c.l.b16 %v108
  %v443 = vunpack.c.h.b16 %v108
  %v444 = vunpack.c.l.b16 %v109
  %v445 = vunpack.c.h.b16 %v109
  %v446 = vunpack.c.l.b16 %v110
  %v447 = vunpack.c.h.b16 %v110
  %v448 = vunpack.c.l.b16 %v111
  %v449 = vunpack.c.h.b16 %v111
  %v450 = vunpack.c.l.b16 %v112
  %v451 = vunpack.c.h.b16 %v112
  %v452 = vunpack.c.l.b16 %v113
  %v453 = vunpack.c.h.b16 %v113
  %v454 = vunpack.c.l.b16 %v114
  %v455 = vunpack.c.h.b16 %v114
  %v456 = vunpack.c.l.b16 %v115
  %v457 = vunpack.c.h.b16 %v115
  %v458 = vunpack.c.l.b16 %v116
  %v459 = vunpack.c.h.b16 %v116
  %v460 = vunpack.c.l.b16 %v117
  %v461 = vunpack.c.h.b16 %v117
  %v462 = vunpack.c.l.b16 %v118
  %v463 = vunpack.c.h.b16 %v118
  %v464 = vunpack.c.l.b16 %v119
  %v465 = vunpack.c.h.b16 %v119
  %v466 = vunpack.c.l.b16 %v120
  %v467 = vunpack.c.h.b16 %v120
  %v468 = vunpack.c.l.b16 %v121
  %v469 = vunpack.c.h.b16 %v121
  %v470 = vunpack.c.l.b16 %v122
  %v471 = vunpack.c.h.b16 %v122
  %v472 = vunpack.c.l.b16 %v123
  %v473 = vunpack.c.h.b16 %v123
  %v474 = vunpack.c.l.b16 %v124
  %v475 = vunpack.c.h.b16 %v124
  %v476 = vunpack.c.l.b16 %v125
  %v477 = vunpack.c.h.b16 %v125
  %v478 = vunpack.c.l.b16 %v126
  %v479 = vunpack.c.h.b16 %v126
  %v480 = vunpack.c.l.b16 %v127
  %v481 = vunpack.c.h.b16 %v127
  %v482 = vpack.c.b16 %v292, %v290
  %v483 = vpack.c.b16 %v293, %v291
  %v484 = vpack.c.b16 %v296, %v294
  %v485 = vpack.c.b16 %v297, %v295
  %v486 = vpack.c.b16 %v300, %v298
  %v487 = vpack.c.b16 %v301, %v299
  %v488 = vpack.c.b16 %v304, %v302
  %v489 = vpack.c.b16 %v305, %v303
  %v490 = vpack.c.b16 %v308, %v306
  %v491 = vpack.c.b16 %v309, %v307
  %v492 = vpack.c.b16 %v312, %v310
  %v493 = vpack.c.b16 %v313, %v311
  %v494 = vpack.c.b16 %v316, %v314
  %v495 = vpack.c.b16 %v317, %v315
  %v496 = vpack.c.b16 %v320, %v318
  %v497 = vpack.c.b16 %v321, %v319
  %v498 = vpack.c.b16 %v324, %v322
  %v499 = vpack.c.b16 %v325, %v323
  %v500 = vpack.c.b16 %v328, %v326
  %v501 = vpack.c.b16 %v329, %v327
  %v502 = vpack.c.b16 %v332, %v330
  %v503 = vpack.c.b16 %v333, %v331
  %v504 = vpack.c.b16 %v336, %v334
  %v505 = vpack.c.b16 %v337, %v335
  %v506 = vpack.c.b16 %v340, %v338
  %v507 = vpack.c.b16 %v341, %v339
  %v508 = vpack.c.b16 %v344, %v342
  %v509 = vpack.c.b16 %v345, %v343
  %v510 = vpack.c.b16 %v348, %v346
  %v511 = vpack.c.b16 %v349, %v347
  %v512 = vpack.c.b16 %v352, %v350
  %v513 = vpack.c.b16 %v353, %v351
  %v514 = vpack.c.b16 %v356, %v354
  %v515 = vpack.c.b16 %v357, %v355
  %v516 = vpack.c.b16 %v360, %v358
  %v517 = vpack.c.b16 %v361, %v359
  %v518 = vpack.c.b16 %v364, %v362
  %v519 = vpack.c.b16 %v365, %v363
  %v520 = vpack.c.b16 %v368, %v366
  %v521 = vpack.c.b16 %v369, %v367
  %v522 = vpack.c.b16 %v372, %v370
  %v523 = vpack.c.b16 %v373, %v371
  %v524 = vpack.c.b16 %v376, %v374
  %v525 = vpack.c.b16 %v377, %v375
  %v526 = vpack.c.b16 %v380, %v378
  %v527 = vpack.c.b16 %v381, %v379
  %v528 = vpack.c.b16 %v384, %v382
  %v529 = vpack.c.b16 %v385, %v383
  %v530 = vpack.c.b16 %v388, %v386
  %v531 = vpack.c.b16 %v389, %v387
  %v532 = vpack.c.b16 %v392, %v390
  %v533 = vpack.c.b16 %v393, %v391
  %v534 = vpack.c.b16 %v396, %v394
  %v535 = vpack.c.b16 %v397, %v395
  %v536 = vpack.c.b16 %v400, %v398
  %v537 = vpack.c.b16 %v401, %v399
  %v538 = vpack.c.b16 %v404, %v402
  %v539 = vpack.c.b16 %v405, %v403
  %v540 = vpack.c.b16 %v408, %v406
  %v541 = vpack.c.b16 %v409, %v407
  %v542 = vpack.c.b16 %v412, %v410
  %v543 = vpack.c.b16 %v413, %v411
  %v544 = vpack.c.b16 %v416, %v414
  %v545 = vpack.c.b16 %v417, %v415
  %v546 = vpack.c.b16 %v420, %v418
  %v547 = vpack.c.b16 %v421, %v419
  %v548 = vpack.c.b16 %v424, %v422
  %v549 = vpack.c.b16 %v425, %v423
  %v550 = vpack.c.b16 %v428, %v426
  %v551 = vpack.c.b16 %v429, %v427
  %v552 = vpack.c.b16 %v432, %v430
  %v553 = vpack.c.b16 %v433, %v431
  %v554 = vpack.c.b16 %v436, %v434
  %v555 = vpack.c.b16 %v437, %v435
  %v556 = vpack.c.b16 %v440, %v438
  %v557 = vpack.c.b16 %v441, %v439
  %v558 = vpack.c.b16 %v444, %v442
  %v559 = vpack.c.b16 %v445, %v443
  %v560 = vpack.c.b16 %v448, %v446
  %v561 = vpack.c.b16 %v449, %v447
  %v562 = vpack.c.b16 %v452, %v450
  %v563 = vpack.c.b16 %v453, %v451
  %v564 = vpack.c.b16 %v456, %v454
  %v565 = vpack.c.b16 %v457, %v455
  %v566 = vpack.c.b16 %v460, %v458
  %v567 = vpack.c.b16 %v461, %v459
  %v568 = vpack.c.b16 %v464, %v462
  %v569 = vpack.c.b16 %v465, %v463
  %v570 = vpack.c.b16 %v468, %v466
  %v571 = vpack.c.b16 %v469, %v467
  %v572 = vpack.c.b16 %v472, %v470
  %v573 = vpack.c.b16 %v473, %v471
  %v574 = vpack.c.b16 %v476, %v474
  %v575 = vpack.c.b16 %v477, %v475
  %v576 = vpack.c.b16 %v480, %v478
  %v577 = vpack.c.b16 %v481, %v479
  %674 = vmatpush.bf16.msra.mxu0 %v496
  %675 = vmatpush.bf16.msra.mxu0 %v494
  %676 = vmatpush.bf16.msra.mxu0 %v492
  %677 = vmatpush.bf16.msra.mxu0 %v490
  %678 = vmatpush.bf16.msra.mxu0 %v488
  %679 = vmatpush.bf16.msra.mxu0 %v486
  %680 = vmatpush.bf16.msra.mxu0 %v484
  %681 = vmatpush.bf16.msra.mxu0 %v482
  %682 = vmatmul.bf16.gmra.mxu0 %v170
  %v683 = vpop.f32.mrf.mxu0
  %v684 = vadd.f32 %v130, %v683
  %v685 = vpop.f32.mrf.mxu0
  %v686 = vadd.f32 %v130, %v685
  %687 = vmatmul.bf16.gmra.mxu0 %v176
  %v688 = vpop.f32.mrf.mxu0
  %v689 = vadd.f32 %v130, %v688
  %v690 = vpop.f32.mrf.mxu0
  %v691 = vadd.f32 %v130, %v690
  %692 = vdwg.mxu0
  %693 = vmatpush.bf16.msra.mxu0 %v512
  %694 = vmatpush.bf16.msra.mxu0 %v510
  %695 = vmatpush.bf16.msra.mxu0 %v508
  %696 = vmatpush.bf16.msra.mxu0 %v506
  %697 = vmatpush.bf16.msra.mxu0 %v504
  %698 = vmatpush.bf16.msra.mxu0 %v502
  %699 = vmatpush.bf16.msra.mxu0 %v500
  %700 = vmatpush.bf16.msra.mxu0 %v498
  %701 = vmatmul.bf16.gmra.mxu0 %v171
  %v702 = vpop.f32.mrf.mxu0
  %v703 = vadd.f32 %v684, %v702
  %v704 = vpop.f32.mrf.mxu0
  %v705 = vadd.f32 %v686, %v704
  %706 = vmatmul.bf16.gmra.mxu0 %v177
  %v707 = vpop.f32.mrf.mxu0
  %v708 = vadd.f32 %v689, %v707
  %v709 = vpop.f32.mrf.mxu0
  %v710 = vadd.f32 %v691, %v709
  %711 = vdwg.mxu0
  %712 = vmatpush.bf16.msra.mxu0 %v528
  %713 = vmatpush.bf16.msra.mxu0 %v526
  %714 = vmatpush.bf16.msra.mxu0 %v524
  %715 = vmatpush.bf16.msra.mxu0 %v522
  %716 = vmatpush.bf16.msra.mxu0 %v520
  %717 = vmatpush.bf16.msra.mxu0 %v518
  %718 = vmatpush.bf16.msra.mxu0 %v516
  %719 = vmatpush.bf16.msra.mxu0 %v514
  %720 = vmatmul.bf16.gmra.mxu0 %v172
  %v721 = vpop.f32.mrf.mxu0
  %v722 = vadd.f32 %v703, %v721
  %v723 = vpop.f32.mrf.mxu0
  %v724 = vadd.f32 %v705, %v723
  %725 = vmatmul.bf16.gmra.mxu0 %v178
  %v726 = vpop.f32.mrf.mxu0
  %v727 = vadd.f32 %v708, %v726
  %v728 = vpop.f32.mrf.mxu0
  %v729 = vadd.f32 %v710, %v728
  %730 = vdwg.mxu0
  %731 = vmatpush.bf16.msra.mxu0 %v544
  %732 = vmatpush.bf16.msra.mxu0 %v542
  %733 = vmatpush.bf16.msra.mxu0 %v540
  %734 = vmatpush.bf16.msra.mxu0 %v538
  %735 = vmatpush.bf16.msra.mxu0 %v536
  %736 = vmatpush.bf16.msra.mxu0 %v534
  %737 = vmatpush.bf16.msra.mxu0 %v532
  %738 = vmatpush.bf16.msra.mxu0 %v530
  %739 = vmatmul.bf16.gmra.mxu0 %v173
  %v740 = vpop.f32.mrf.mxu0
  %v741 = vadd.f32 %v722, %v740
  %v742 = vpop.f32.mrf.mxu0
  %v743 = vadd.f32 %v724, %v742
  %744 = vmatmul.bf16.gmra.mxu0 %v179
  %v745 = vpop.f32.mrf.mxu0
  %v746 = vadd.f32 %v727, %v745
  %v747 = vpop.f32.mrf.mxu0
  %v748 = vadd.f32 %v729, %v747
  %749 = vdwg.mxu0
  %750 = vmatpush.bf16.msra.mxu0 %v560
  %751 = vmatpush.bf16.msra.mxu0 %v558
  %752 = vmatpush.bf16.msra.mxu0 %v556
  %753 = vmatpush.bf16.msra.mxu0 %v554
  %754 = vmatpush.bf16.msra.mxu0 %v552
  %755 = vmatpush.bf16.msra.mxu0 %v550
  %756 = vmatpush.bf16.msra.mxu0 %v548
  %757 = vmatpush.bf16.msra.mxu0 %v546
  %758 = vmatmul.bf16.gmra.mxu0 %v174
  %v759 = vpop.f32.mrf.mxu0
  %v760 = vadd.f32 %v741, %v759
  %v761 = vpop.f32.mrf.mxu0
  %v762 = vadd.f32 %v743, %v761
  %763 = vmatmul.bf16.gmra.mxu0 %v180
  %v764 = vpop.f32.mrf.mxu0
  %v765 = vadd.f32 %v746, %v764
  %v766 = vpop.f32.mrf.mxu0
  %v767 = vadd.f32 %v748, %v766
  %768 = vdwg.mxu0
  %769 = vmatpush.bf16.msra.mxu0 %v576
  %770 = vmatpush.bf16.msra.mxu0 %v574
  %771 = vmatpush.bf16.msra.mxu0 %v572
  %772 = vmatpush.bf16.msra.mxu0 %v570
  %773 = vmatpush.bf16.msra.mxu0 %v568
  %774 = vmatpush.bf16.msra.mxu0 %v566
  %775 = vmatpush.bf16.msra.mxu0 %v564
  %776 = vmatpush.bf16.msra.mxu0 %v562
  %777 = vmatmul.bf16.gmra.mxu0 %v175
  %v778 = vpop.f32.mrf.mxu0
  %v779 = vadd.f32 %v760, %v778
  %v780 = vpop.f32.mrf.mxu0
  %v781 = vadd.f32 %v762, %v780
  %782 = vmatmul.bf16.gmra.mxu0 %v181
  %v783 = vpop.f32.mrf.mxu0
  %v784 = vadd.f32 %v765, %v783
  %v785 = vpop.f32.mrf.mxu0
  %v786 = vadd.f32 %v767, %v785
  %787 = vdwg.mxu0
  %788 = vmatpush.bf16.msra.mxu0 %v497
  %789 = vmatpush.bf16.msra.mxu0 %v495
  %790 = vmatpush.bf16.msra.mxu0 %v493
  %791 = vmatpush.bf16.msra.mxu0 %v491
  %792 = vmatpush.bf16.msra.mxu0 %v489
  %793 = vmatpush.bf16.msra.mxu0 %v487
  %794 = vmatpush.bf16.msra.mxu0 %v485
  %795 = vmatpush.bf16.msra.mxu0 %v483
  %796 = vmatmul.bf16.gmra.mxu0 %v170
  %v797 = vpop.f32.mrf.mxu0
  %v798 = vadd.f32 %v131, %v797
  %v799 = vpop.f32.mrf.mxu0
  %v800 = vadd.f32 %v131, %v799
  %801 = vmatmul.bf16.gmra.mxu0 %v176
  %v802 = vpop.f32.mrf.mxu0
  %v803 = vadd.f32 %v131, %v802
  %v804 = vpop.f32.mrf.mxu0
  %v805 = vadd.f32 %v131, %v804
  %806 = vdwg.mxu0
  %807 = vmatpush.bf16.msra.mxu0 %v513
  %808 = vmatpush.bf16.msra.mxu0 %v511
  %809 = vmatpush.bf16.msra.mxu0 %v509
  %810 = vmatpush.bf16.msra.mxu0 %v507
  %811 = vmatpush.bf16.msra.mxu0 %v505
  %812 = vmatpush.bf16.msra.mxu0 %v503
  %813 = vmatpush.bf16.msra.mxu0 %v501
  %814 = vmatpush.bf16.msra.mxu0 %v499
  %815 = vmatmul.bf16.gmra.mxu0 %v171
  %v816 = vpop.f32.mrf.mxu0
  %v817 = vadd.f32 %v798, %v816
  %v818 = vpop.f32.mrf.mxu0
  %v819 = vadd.f32 %v800, %v818
  %820 = vmatmul.bf16.gmra.mxu0 %v177
  %v821 = vpop.f32.mrf.mxu0
  %v822 = vadd.f32 %v803, %v821
  %v823 = vpop.f32.mrf.mxu0
  %v824 = vadd.f32 %v805, %v823
  %825 = vdwg.mxu0
  %826 = vmatpush.bf16.msra.mxu0 %v529
  %827 = vmatpush.bf16.msra.mxu0 %v527
  %828 = vmatpush.bf16.msra.mxu0 %v525
  %829 = vmatpush.bf16.msra.mxu0 %v523
  %830 = vmatpush.bf16.msra.mxu0 %v521
  %831 = vmatpush.bf16.msra.mxu0 %v519
  %832 = vmatpush.bf16.msra.mxu0 %v517
  %833 = vmatpush.bf16.msra.mxu0 %v515
  %834 = vmatmul.bf16.gmra.mxu0 %v172
  %v835 = vpop.f32.mrf.mxu0
  %v836 = vadd.f32 %v817, %v835
  %v837 = vpop.f32.mrf.mxu0
  %v838 = vadd.f32 %v819, %v837
  %839 = vmatmul.bf16.gmra.mxu0 %v178
  %v840 = vpop.f32.mrf.mxu0
  %v841 = vadd.f32 %v822, %v840
  %v842 = vpop.f32.mrf.mxu0
  %v843 = vadd.f32 %v824, %v842
  %844 = vdwg.mxu0
  %845 = vmatpush.bf16.msra.mxu0 %v545
  %846 = vmatpush.bf16.msra.mxu0 %v543
  %847 = vmatpush.bf16.msra.mxu0 %v541
  %848 = vmatpush.bf16.msra.mxu0 %v539
  %849 = vmatpush.bf16.msra.mxu0 %v537
  %850 = vmatpush.bf16.msra.mxu0 %v535
  %851 = vmatpush.bf16.msra.mxu0 %v533
  %852 = vmatpush.bf16.msra.mxu0 %v531
  %853 = vmatmul.bf16.gmra.mxu0 %v173
  %v854 = vpop.f32.mrf.mxu0
  %v855 = vadd.f32 %v836, %v854
  %v856 = vpop.f32.mrf.mxu0
  %v857 = vadd.f32 %v838, %v856
  %858 = vmatmul.bf16.gmra.mxu0 %v179
  %v859 = vpop.f32.mrf.mxu0
  %v860 = vadd.f32 %v841, %v859
  %v861 = vpop.f32.mrf.mxu0
  %v862 = vadd.f32 %v843, %v861
  %863 = vdwg.mxu0
  %864 = vmatpush.bf16.msra.mxu0 %v561
  %865 = vmatpush.bf16.msra.mxu0 %v559
  %866 = vmatpush.bf16.msra.mxu0 %v557
  %867 = vmatpush.bf16.msra.mxu0 %v555
  %868 = vmatpush.bf16.msra.mxu0 %v553
  %869 = vmatpush.bf16.msra.mxu0 %v551
  %870 = vmatpush.bf16.msra.mxu0 %v549
  %871 = vmatpush.bf16.msra.mxu0 %v547
  %872 = vmatmul.bf16.gmra.mxu0 %v174
  %v873 = vpop.f32.mrf.mxu0
  %v874 = vadd.f32 %v855, %v873
  %v875 = vpop.f32.mrf.mxu0
  %v876 = vadd.f32 %v857, %v875
  %877 = vmatmul.bf16.gmra.mxu0 %v180
  %v878 = vpop.f32.mrf.mxu0
  %v879 = vadd.f32 %v860, %v878
  %v880 = vpop.f32.mrf.mxu0
  %v881 = vadd.f32 %v862, %v880
  %882 = vdwg.mxu0
  %883 = vmatpush.bf16.msra.mxu0 %v577
  %884 = vmatpush.bf16.msra.mxu0 %v575
  %885 = vmatpush.bf16.msra.mxu0 %v573
  %886 = vmatpush.bf16.msra.mxu0 %v571
  %887 = vmatpush.bf16.msra.mxu0 %v569
  %888 = vmatpush.bf16.msra.mxu0 %v567
  %889 = vmatpush.bf16.msra.mxu0 %v565
  %890 = vmatpush.bf16.msra.mxu0 %v563
  %891 = vmatmul.bf16.gmra.mxu0 %v175
  %v892 = vpop.f32.mrf.mxu0
  %v893 = vadd.f32 %v874, %v892
  %v894 = vpop.f32.mrf.mxu0
  %v895 = vadd.f32 %v876, %v894
  %896 = vmatmul.bf16.gmra.mxu0 %v181
  %v897 = vpop.f32.mrf.mxu0
  %v898 = vadd.f32 %v879, %v897
  %v899 = vpop.f32.mrf.mxu0
  %v900 = vadd.f32 %v881, %v899
  %901 = vdwg.mxu0
  %v902 = vmax.f32 %v779, 0.0
  %v903 = vmax.f32 %v781, 0.0
  %v904 = vmax.f32 %v784, 0.0
  %v905 = vmax.f32 %v786, 0.0
  %v906 = vpack.c.bf16 %v903, %v902
  %v907 = vpack.c.bf16 %v905, %v904
  %v908 = vld [vmem:[%s2] sm:$0xff]
  %v909 = vld [vmem:[%s2 + $0x8] sm:$0xf]
  %v910 = vld [vmem:[%s2 + $0xc] sm:$0xff]
  %v911 = vld [vmem:[%s2 + $0x14] sm:$0xf]
  %v912 = vld [vmem:[%s2 + $0x18] sm:$0xff]
  %v913 = vld [vmem:[%s2 + $0x20] sm:$0xf]
  %v914 = vld [vmem:[%s2 + $0x24] sm:$0xff]
  %v915 = vld [vmem:[%s2 + $0x2c] sm:$0xf]
  %v916 = vld [vmem:[%s2 + $0x30] sm:$0xff]
  %v917 = vld [vmem:[%s2 + $0x38] sm:$0xf]
  %v918 = vld [vmem:[%s2 + $0x3c] sm:$0xff]
  %v919 = vld [vmem:[%s2 + $0x44] sm:$0xf]
  %v920 = vld [vmem:[%s2 + $0x48] sm:$0xff]
  %v921 = vld [vmem:[%s2 + $0x50] sm:$0xf]
  %v922 = vld [vmem:[%s2 + $0x54] sm:$0xff]
  %v923 = vld [vmem:[%s2 + $0x5c] sm:$0xf]
  %v924 = vld [vmem:[%s2 + $0x60] sm:$0xff]
  %v925 = vld [vmem:[%s2 + $0x68] sm:$0xf]
  %v926 = vld [vmem:[%s2 + $0x6c] sm:$0xff]
  %v927 = vld [vmem:[%s2 + $0x74] sm:$0xf]
  %v928 = vld [vmem:[%s2 + $0x78] sm:$0xff]
  %v929 = vld [vmem:[%s2 + $0x80] sm:$0xf]
  %v930 = vld [vmem:[%s2 + $0x84] sm:$0xff]
  %v931 = vld [vmem:[%s2 + $0x8c] sm:$0xf]
  %v932 = vld [vmem:[%s2 + $0x90] sm:$0xff]
  %v933 = vld [vmem:[%s2 + $0x98] sm:$0xf]
  %v934 = vld [vmem:[%s2 + $0x9c] sm:$0xff]
  %v935 = vld [vmem:[%s2 + $0xa4] sm:$0xf]
  %v936 = vld [vmem:[%s2 + $0xa8] sm:$0xff]
  %v937 = vld [vmem:[%s2 + $0xb0] sm:$0xf]
  %v938 = vld [vmem:[%s2 + $0xb4] sm:$0xff]
  %v939 = vld [vmem:[%s2 + $0xbc] sm:$0xf]
  %v972 = vunpack.c.l.b16 %v908
  %v973 = vunpack.c.h.b16 %v908
  %v974 = vunpack.c.l.b16 %v909
  %v975 = vunpack.c.l.b16 %v910
  %v976 = vunpack.c.h.b16 %v910
  %v977 = vunpack.c.l.b16 %v911
  %v978 = vunpack.c.l.b16 %v912
  %v979 = vunpack.c.h.b16 %v912
  %v980 = vunpack.c.l.b16 %v913
  %v981 = vunpack.c.l.b16 %v914
  %v982 = vunpack.c.h.b16 %v914
  %v983 = vunpack.c.l.b16 %v915
  %v984 = vunpack.c.l.b16 %v916
  %v985 = vunpack.c.h.b16 %v916
  %v986 = vunpack.c.l.b16 %v917
  %v987 = vunpack.c.l.b16 %v918
  %v988 = vunpack.c.h.b16 %v918
  %v989 = vunpack.c.l.b16 %v919
  %v990 = vunpack.c.l.b16 %v920
  %v991 = vunpack.c.h.b16 %v920
  %v992 = vunpack.c.l.b16 %v921
  %v993 = vunpack.c.l.b16 %v922
  %v994 = vunpack.c.h.b16 %v922
  %v995 = vunpack.c.l.b16 %v923
  %v996 = vunpack.c.l.b16 %v924
  %v997 = vunpack.c.h.b16 %v924
  %v998 = vunpack.c.l.b16 %v925
  %v999 = vunpack.c.l.b16 %v926
  %v1000 = vunpack.c.h.b16 %v926
  %v1001 = vunpack.c.l.b16 %v927
  %v1002 = vunpack.c.l.b16 %v928
  %v1003 = vunpack.c.h.b16 %v928
  %v1004 = vunpack.c.l.b16 %v929
  %v1005 = vunpack.c.l.b16 %v930
  %v1006 = vunpack.c.h.b16 %v930
  %v1007 = vunpack.c.l.b16 %v931
  %v1008 = vunpack.c.l.b16 %v932
  %v1009 = vunpack.c.h.b16 %v932
  %v1010 = vunpack.c.l.b16 %v933
  %v1011 = vunpack.c.l.b16 %v934
  %v1012 = vunpack.c.h.b16 %v934
  %v1013 = vunpack.c.l.b16 %v935
  %v1014 = vunpack.c.l.b16 %v936
  %v1015 = vunpack.c.h.b16 %v936
  %v1016 = vunpack.c.l.b16 %v937
  %v1017 = vunpack.c.l.b16 %v938
  %v1018 = vunpack.c.h.b16 %v938
  %v1019 = vunpack.c.l.b16 %v939
  %v1020 = vpack.c.b16 %v975, %v972
  %v1021 = vpack.c.b16 %v976, %v973
  %v1022 = vpack.c.b16 %v977, %v974
  %v1023 = vpack.c.b16 %v981, %v978
  %v1024 = vpack.c.b16 %v982, %v979
  %v1025 = vpack.c.b16 %v983, %v980
  %v1026 = vpack.c.b16 %v987, %v984
  %v1027 = vpack.c.b16 %v988, %v985
  %v1028 = vpack.c.b16 %v989, %v986
  %v1029 = vpack.c.b16 %v993, %v990
  %v1030 = vpack.c.b16 %v994, %v991
  %v1031 = vpack.c.b16 %v995, %v992
  %v1032 = vpack.c.b16 %v999, %v996
  %v1033 = vpack.c.b16 %v1000, %v997
  %v1034 = vpack.c.b16 %v1001, %v998
  %v1035 = vpack.c.b16 %v1005, %v1002
  %v1036 = vpack.c.b16 %v1006, %v1003
  %v1037 = vpack.c.b16 %v1007, %v1004
  %v1038 = vpack.c.b16 %v1011, %v1008
  %v1039 = vpack.c.b16 %v1012, %v1009
  %v1040 = vpack.c.b16 %v1013, %v1010
  %v1041 = vpack.c.b16 %v1017, %v1014
  %v1042 = vpack.c.b16 %v1018, %v1015
  %v1043 = vpack.c.b16 %v1019, %v1016
  %1068 = vmatpush.bf16.msra.mxu0 %v1041
  %1069 = vmatpush.bf16.msra.mxu0 %v1038
  %1070 = vmatpush.bf16.msra.mxu0 %v1035
  %1071 = vmatpush.bf16.msra.mxu0 %v1032
  %1072 = vmatpush.bf16.msra.mxu0 %v1029
  %1073 = vmatpush.bf16.msra.mxu0 %v1026
  %1074 = vmatpush.bf16.msra.mxu0 %v1023
  %1075 = vmatpush.bf16.msra.mxu0 %v1020
  %1076 = vmatmul.bf16.gmra.mxu0 %v906
  %v1077 = vpop.f32.mrf.mxu0
  %v1078 = vadd.f32 0.0, %v1077
  %v1079 = vpop.f32.mrf.mxu0
  %v1080 = vadd.f32 0.0, %v1079
  %1081 = vmatmul.bf16.gmra.mxu0 %v907
  %v1082 = vpop.f32.mrf.mxu0
  %v1083 = vadd.f32 0.0, %v1082
  %v1084 = vpop.f32.mrf.mxu0
  %v1085 = vadd.f32 0.0, %v1084
  %1086 = vdwg.mxu0
  %1087 = vmatpush.bf16.msra.mxu0 %v1042
  %1088 = vmatpush.bf16.msra.mxu0 %v1039
  %1089 = vmatpush.bf16.msra.mxu0 %v1036
  %1090 = vmatpush.bf16.msra.mxu0 %v1033
  %1091 = vmatpush.bf16.msra.mxu0 %v1030
  %1092 = vmatpush.bf16.msra.mxu0 %v1027
  %1093 = vmatpush.bf16.msra.mxu0 %v1024
  %1094 = vmatpush.bf16.msra.mxu0 %v1021
  %1095 = vmatmul.bf16.gmra.mxu0 %v906
  %v1096 = vpop.f32.mrf.mxu0
  %v1097 = vadd.f32 0.0, %v1096
  %v1098 = vpop.f32.mrf.mxu0
  %v1099 = vadd.f32 0.0, %v1098
  %1100 = vmatmul.bf16.gmra.mxu0 %v907
  %v1101 = vpop.f32.mrf.mxu0
  %v1102 = vadd.f32 0.0, %v1101
  %v1103 = vpop.f32.mrf.mxu0
  %v1104 = vadd.f32 0.0, %v1103
  %1105 = vdwg.mxu0
  %1106 = vmatpush.bf16.msra.mxu0 %v1043
  %1107 = vmatpush.bf16.msra.mxu0 %v1040
  %1108 = vmatpush.bf16.msra.mxu0 %v1037
  %1109 = vmatpush.bf16.msra.mxu0 %v1034
  %1110 = vmatpush.bf16.msra.mxu0 %v1031
  %1111 = vmatpush.bf16.msra.mxu0 %v1028
  %1112 = vmatpush.bf16.msra.mxu0 %v1025
  %1113 = vmatpush.bf16.msra.mxu0 %v1022
  %1114 = vmatmul.bf16.gmra.mxu0 %v906
  %v1115 = vpop.f32.mrf.mxu0
  %v1116 = vadd.f32 0.0, %v1115
  %v1117 = vpop.f32.mrf.mxu0
  %v1118 = vadd.f32 0.0, %v1117
  %1119 = vmatmul.bf16.gmra.mxu0 %v907
  %v1120 = vpop.f32.mrf.mxu0
  %v1121 = vadd.f32 0.0, %v1120
  %v1122 = vpop.f32.mrf.mxu0
  %v1123 = vadd.f32 0.0, %v1122
  %1124 = vdwg.mxu0
  %v1125 = vlaneseq
  %v1126 = vshrl.u32 %v1125, 7
  %v1127 = vadd.s32 %v1126, 8
  %v1128 = vadd.s32 %v1126, 16
  %v1129 = vadd.s32 %v1126, 24
  %v1130 = vand.u32 %v1126, 15
  %v1131 = vand.u32 %v1127, 15
  %v1132 = vand.u32 %v1128, 15
  %v1133 = vand.u32 %v1129, 15
  %vm1134 = vcmp.ne.s32.totalorder %v1130, 0
  %vm1135 = vcmp.ne.s32.totalorder %v1131, 0
  %vm1136 = vcmp.ne.s32.totalorder %v1132, 0
  %vm1137 = vcmp.ne.s32.totalorder %v1133, 0
  %v1138 = vsel %vm1134, 1, 0
  %v1139 = vsel %vm1135, 1, 0
  %v1140 = vsel %vm1136, 1, 0
  %v1141 = vsel %vm1137, 1, 0
  %v1142 = vcvt.s32.f32 %v1138
  %v1143 = vcvt.s32.f32 %v1139
  %v1144 = vcvt.s32.f32 %v1140
  %v1145 = vcvt.s32.f32 %v1141
  %vm1146 = vcmp.ne.s32.totalorder %v1130, 15
  %vm1147 = vcmp.ne.s32.totalorder %v1131, 15
  %vm1148 = vcmp.ne.s32.totalorder %v1132, 15
  %vm1149 = vcmp.ne.s32.totalorder %v1133, 15
  %v1150 = vsel %vm1146, 1, 0
  %v1151 = vsel %vm1147, 1, 0
  %v1152 = vsel %vm1148, 1, 0
  %v1153 = vsel %vm1149, 1, 0
  %v1154 = vcvt.s32.f32 %v1150
  %v1155 = vcvt.s32.f32 %v1151
  %v1156 = vcvt.s32.f32 %v1152
  %v1157 = vcvt.s32.f32 %v1153
  %v1158 = vrot.slane %v1078, 7
  %v1159 = vrot.slane %v1080, 7
  %v1160 = vrot.slane %v1083, 7
  %v1161 = vrot.slane %v1085, 7
  %vm1162 = vcmp.lt.s32.totalorder %v1126, 1
  %v1163 = vsel %vm1162, %v1160, %v1161
  %v1164 = vsel %vm1162, %v1159, %v1160
  %v1165 = vsel %vm1162, %v1158, %v1159
  %v1166 = vsel %vm1162, %v1161, %v1158
  %v1167 = vmul.f32 %v1142, %v1166
  %v1168 = vmul.f32 %v1143, %v1165
  %v1169 = vmul.f32 %v1144, %v1164
  %v1170 = vmul.f32 %v1145, %v1163
  %v1171 = vadd.f32 %v1097, %v1167
  %v1172 = vadd.f32 %v1099, %v1168
  %v1173 = vadd.f32 %v1102, %v1169
  %v1174 = vadd.f32 %v1104, %v1170
  %v1175 = vrot.slane %v1116, 1
  %v1176 = vrot.slane %v1118, 1
  %v1177 = vrot.slane %v1121, 1
  %v1178 = vrot.slane %v1123, 1
  %vm1179 = vcmp.lt.s32.totalorder %v1126, 7
  %v1180 = vsel %vm1179, %v1177, %v1178
  %v1181 = vsel %vm1179, %v1176, %v1177
  %v1182 = vsel %vm1179, %v1175, %v1176
  %v1183 = vsel %vm1179, %v1178, %v1175
  %v1184 = vmul.f32 %v1154, %v1182
  %v1185 = vmul.f32 %v1155, %v1181
  %v1186 = vmul.f32 %v1156, %v1180
  %v1187 = vmul.f32 %v1157, %v1183
  %v1188 = vadd.f32 %v1171, %v1184
  %v1189 = vadd.f32 %v1172, %v1185
  %v1190 = vadd.f32 %v1173, %v1186
  %v1191 = vadd.f32 %v1174, %v1187
  %v1192 = vld [vmem:[%s4] sm:$0x1]
  %v1194 = vperm.slane %v1192, 0
  %v1196 = vadd.f32 %v1188, %v1194
  %v1197 = vadd.f32 %v1189, %v1194
  %v1198 = vadd.f32 %v1190, %v1194
  %v1199 = vadd.f32 %v1191, %v1194
  %v1200 = vadd.f32 %v1196, %v893
  %v1201 = vadd.f32 %v1197, %v895
  %v1202 = vadd.f32 %v1198, %v898
  %v1203 = vadd.f32 %v1199, %v900
  %v1204 = vmax.f32 %v1200, 0.0
  %v1205 = vmax.f32 %v1201, 0.0
  %v1206 = vmax.f32 %v1202, 0.0
  %v1207 = vmax.f32 %v1203, 0.0
  %1208 = vst [vmem:[%s5] sm:$0xff] %v1204
  %1209 = vst [vmem:[%s5 + $0x8] sm:$0xff] %v1205
  %1210 = vst [vmem:[%s5 + $0x10] sm:$0xff] %v1206
  %1211 = vst [vmem:[%s5 + $0x18] sm:$0xff] %v1207
  // Predicated region
  $region22: #{stacked_resnet_block_forward.1} parent=0 // pred_check
    _
  $region23: #{stacked_resnet_block_forward.1} parent=0 // pred_check_branch
    %1213 = sbr.rel (0) target = $region25
  $region24: #{stacked_resnet_block_forward.1} parent=0 // pred_region
    _
  $region25: #{stacked_resnet_block_forward.1} parent=0 // pred_fallthru
    _
  // Predicated region
  $region26: #{stacked_resnet_block_forward.1} parent=0 // pred_check
    _
  $region27: #{stacked_resnet_block_forward.1} parent=0 // pred_check_branch
    %1215 = sbr.rel (0) target = $region29
  $region28: #{stacked_resnet_block_forward.1} parent=0 // pred_region
    _
  $region29: #{stacked_resnet_block_forward.1} parent=0 // pred_fallthru
    _

</llo_original>
